<compile_context>
chip_gen: v7x
topology: tpu7x:2x2x1
jax: 0.10.0
libtpu: 0.0.40
codegen_flags: <defaults>
</compile_context>

<pallas_src>
import jax
import jax.numpy as jnp
from jax import lax
from jax.experimental import pallas as pl
from jax.experimental.pallas import tpu as pltpu

_SUBLANE = 8
_LANE = 128


def _round_up(x, m):
    return ((x + m - 1) // m) * m


def _gelu_exact(x):
    # nn.GELU() default = exact erf formulation
    return 0.5 * x * (1.0 + lax.erf(x * (1.0 / jnp.sqrt(2.0)).astype(x.dtype)))


# ---------------- fused adapters + classifier (pooling hoisted to wrapper) -------- #
def fused_model_kernel(person_ref, scene_pool_ref, text_pool_ref,
                       wd_ref, bd_ref, wu_ref, bu_ref,
                       wp_ref, ws_ref, wt_ref, bc_ref,
                       o_ref):
    n_layers = wd_ref.shape[0]

    x = person_ref[...]                                              # [TB, d_in] f32

    # ----- Adapter_model stack: Linear -> GELU -> Linear -> residual ----- #
    # L is tiny and compile-time known -> statically unrolled loop, all weights
    # resident in VMEM, activation carried in registers (no HBM round trips).
    for l in range(n_layers):
        h = jnp.dot(x.astype(jnp.bfloat16), wd_ref[l],
                    preferred_element_type=jnp.float32) + bd_ref[l]  # [TB, d_mid] f32
        h = _gelu_exact(h)
        up = jnp.dot(h.astype(jnp.bfloat16), wu_ref[l],
                     preferred_element_type=jnp.float32) + bu_ref[l]
        x = x + up                                                   # residual, f32

    # ----- classifier_fc over concat([person, scene_pool, text_pool]) ----- #
    # concat realised by row-splitting the classifier weight into wp/ws/wt.
    logits = jnp.dot(x.astype(jnp.bfloat16), wp_ref[...],
                     preferred_element_type=jnp.float32)
    logits = logits + jnp.dot(scene_pool_ref[...].astype(jnp.bfloat16), ws_ref[...],
                              preferred_element_type=jnp.float32)
    logits = logits + jnp.dot(text_pool_ref[...].astype(jnp.bfloat16), wt_ref[...],
                              preferred_element_type=jnp.float32)
    o_ref[...] = (logits + bc_ref[...]).astype(o_ref.dtype)


def _pad_rows(x, rows):
    pad = rows - x.shape[0]
    if pad == 0:
        return x
    return jnp.pad(x, ((0, pad),) + ((0, 0),) * (x.ndim - 1))


def text_scene_comb_person_forward(params, person_feat, scene_feat, text_feat, text_mask):
    B, d_in = person_feat.shape
    L, _, d_mid = params["wd"].shape
    Ds = scene_feat.shape[2]
    C_pad = params["wp"].shape[1]
    C = params["num_classes"]

    # ----- MCA_ED stand-in, hoisted out of the kernel (outputs are only B x Ds) ----
    # TODO(synk): MCA_ED (MCAN encoder-decoder) source was not provided; its output
    # mca_feat (dim = 2*scene_feat_dim) is approximated by mean pooling of scene
    # tokens concat masked mean pooling of text tokens.
    scene_pool = jnp.mean(scene_feat.astype(jnp.float32), axis=1)          # [B, Ds]
    mask = text_mask.astype(jnp.float32)
    denom = jnp.maximum(jnp.sum(mask, axis=1, keepdims=True), 1.0)
    text_pool = (jnp.sum(text_feat.astype(jnp.float32) * mask[:, :, None], axis=1)
                 / denom)                                                  # [B, Ds]

    # Batch tiling: multiple of the f32 sublane, capped at 128 rows per tile; the
    # grid axis is "parallel" so v7x's two TensorCores split real batches.
    TB = min(128, _round_up(B, _SUBLANE))
    B_pad = _round_up(B, TB)
    n_tiles = B_pad // TB

    person_p = _pad_rows(person_feat.astype(jnp.float32), B_pad)
    scene_p = _pad_rows(scene_pool, B_pad)
    text_p = _pad_rows(text_pool, B_pad)

    logits_padded = pl.pallas_call(
        fused_model_kernel,
        out_shape=jax.ShapeDtypeStruct((B_pad, C_pad), jnp.float32),
        grid_spec=pltpu.PrefetchScalarGridSpec(
            num_scalar_prefetch=0,
            grid=(n_tiles,),
            in_specs=[
                pl.BlockSpec((TB, d_in), lambda i: (i, 0)),               # person tile
                pl.BlockSpec((TB, Ds), lambda i: (i, 0)),                 # scene_pool tile
                pl.BlockSpec((TB, Ds), lambda i: (i, 0)),                 # text_pool tile
                pl.BlockSpec((L, d_in, d_mid), lambda i: (0, 0, 0)),      # wd (resident)
                pl.BlockSpec((L, 1, d_mid), lambda i: (0, 0, 0)),         # bd
                pl.BlockSpec((L, d_mid, d_in), lambda i: (0, 0, 0)),      # wu
                pl.BlockSpec((L, 1, d_in), lambda i: (0, 0, 0)),          # bu
                pl.BlockSpec((d_in, C_pad), lambda i: (0, 0)),            # wp
                pl.BlockSpec((Ds, C_pad), lambda i: (0, 0)),              # ws
                pl.BlockSpec((Ds, C_pad), lambda i: (0, 0)),              # wt
                pl.BlockSpec((1, C_pad), lambda i: (0, 0)),               # bc
            ],
            out_specs=pl.BlockSpec((TB, C_pad), lambda i: (i, 0)),        # lane-dense out
        ),
        compiler_params=pltpu.CompilerParams(
            dimension_semantics=("parallel",),
            vmem_limit_bytes=48 * 1024 * 1024,   # within v7x's 64 MiB physical VMEM
        ),
    )(person_p, scene_p, text_p,
      params["wd"], params["bd"], params["wu"], params["bu"],
      params["wp"], params["ws"], params["wt"], params["bc"])

    return logits_padded[:B, :C]


# ------------------------------ parameter init ------------------------------------ #
def _linear_init(key, fan_in, fan_out):
    # PyTorch nn.Linear default: U(-1/sqrt(fan_in), 1/sqrt(fan_in))
    kw, kb = jax.random.split(key)
    bound = 1.0 / float(jnp.sqrt(fan_in))
    w = jax.random.uniform(kw, (fan_in, fan_out), jnp.float32, -bound, bound)
    b = jax.random.uniform(kb, (1, fan_out), jnp.float32, -bound, bound)
    return w, b


def init_params(key, in_feat_dim, mid_feat_dim, scene_feat_dim, num_classes,
                num_adapter_layers):
    assert num_adapter_layers >= 1
    wds, bds, wus, bus = [], [], [], []
    for _ in range(num_adapter_layers):
        key, k1, k2 = jax.random.split(key, 3)
        wd, bd = _linear_init(k1, in_feat_dim, mid_feat_dim)   # fc_downsample
        wu, bu = _linear_init(k2, mid_feat_dim, in_feat_dim)   # fc_upsample
        wds.append(wd); bds.append(bd); wus.append(wu); bus.append(bu)

    key, kc = jax.random.split(key)
    inp_cls_feat_dim = 2 * scene_feat_dim + in_feat_dim
    wc, bc = _linear_init(kc, inp_cls_feat_dim, num_classes)   # classifier_fc

    # Pad classifier columns to a lane multiple so the kernel output is lane-dense.
    c_pad = _round_up(num_classes, _LANE)
    wc_p = jnp.pad(wc, ((0, 0), (0, c_pad - num_classes)))
    bc_p = jnp.pad(bc, ((0, 0), (0, c_pad - num_classes)))

    return {
        # adapter weights stacked over layers; bf16 halves HBM weight traffic and is
        # the native MXU operand dtype (kernel accumulates in f32).
        "wd": jnp.stack(wds).astype(jnp.bfloat16),   # (L, d_in, d_mid)
        "bd": jnp.stack(bds),                        # (L, 1, d_mid) f32
        "wu": jnp.stack(wus).astype(jnp.bfloat16),   # (L, d_mid, d_in)
        "bu": jnp.stack(bus),                        # (L, 1, d_in)  f32
        # classifier weight row-split for concat fusion, columns padded to 128
        "wp": wc_p[:in_feat_dim].astype(jnp.bfloat16),
        "ws": wc_p[in_feat_dim:in_feat_dim + scene_feat_dim].astype(jnp.bfloat16),
        "wt": wc_p[in_feat_dim + scene_feat_dim:].astype(jnp.bfloat16),
        "bc": bc_p,                                  # (1, C_pad) f32
        "num_classes": num_classes,
    }


if __name__ == "__main__":
    # Small shapes consistent with the module's forward.
    B, S, T = 2, 4, 8
    in_feat_dim, mid_feat_dim, scene_feat_dim = 256, 128, 128
    num_classes, num_adapter_layers = 26, 2

    key = jax.random.PRNGKey(0)
    kp, ks, kt, kparam = jax.random.split(key, 4)
    person_feat = jax.random.normal(kp, (B, in_feat_dim), jnp.float32)
    scene_feat = jax.random.normal(ks, (B, S, scene_feat_dim), jnp.float32)
    text_feat = jax.random.normal(kt, (B, T, scene_feat_dim), jnp.float32)
    # last two text tokens padded
    text_mask = jnp.concatenate(
        [jnp.ones((B, T - 2), jnp.float32), jnp.zeros((B, 2), jnp.float32)], axis=1)

    params = init_params(kparam, in_feat_dim, mid_feat_dim, scene_feat_dim,
                         num_classes, num_adapter_layers)

    logits = text_scene_comb_person_forward(
        params, person_feat, scene_feat, text_feat, text_mask)
    jax.block_until_ready(logits)
    assert logits.shape == (B, num_classes)
    print("KERNEL_OK")
</pallas_src>

<mosaic_0001>
module attributes {stable_mosaic.version = 11 : i64} {
  func.func @fused_model_kernel(%arg0: i32, %arg1: memref<8x256xf32, #tpu.memory_space<vmem>>, %arg2: memref<8x128xf32, #tpu.memory_space<vmem>>, %arg3: memref<8x128xf32, #tpu.memory_space<vmem>>, %arg4: memref<2x256x128xbf16, #tpu.memory_space<vmem>>, %arg5: memref<2x1x128xf32, #tpu.memory_space<vmem>>, %arg6: memref<2x128x256xbf16, #tpu.memory_space<vmem>>, %arg7: memref<2x1x256xf32, #tpu.memory_space<vmem>>, %arg8: memref<256x128xbf16, #tpu.memory_space<vmem>>, %arg9: memref<128x128xbf16, #tpu.memory_space<vmem>>, %arg10: memref<128x128xbf16, #tpu.memory_space<vmem>>, %arg11: memref<1x128xf32, #tpu.memory_space<vmem>>, %arg12: memref<8x128xf32, #tpu.memory_space<vmem>>) attributes {dimension_semantics = [#tpu.dimension_semantics<parallel>], iteration_bounds = array<i64: 1>, scalar_prefetch = 0 : i64, scratch_operands = 0 : i64, tpu.core_type = #tpu.core_type<tc>, window_params = [{transform_indices = @transform_0, window_bounds = array<i64: 8, 256>}, {transform_indices = @transform_1, window_bounds = array<i64: 8, 128>}, {transform_indices = @transform_2, window_bounds = array<i64: 8, 128>}, {pipeline_mode = #tpu.pipeline_mode<synchronous>, transform_indices = @transform_3, window_bounds = array<i64: 2, 256, 128>}, {pipeline_mode = #tpu.pipeline_mode<synchronous>, transform_indices = @transform_4, window_bounds = array<i64: 2, 1, 128>}, {pipeline_mode = #tpu.pipeline_mode<synchronous>, transform_indices = @transform_5, window_bounds = array<i64: 2, 128, 256>}, {pipeline_mode = #tpu.pipeline_mode<synchronous>, transform_indices = @transform_6, window_bounds = array<i64: 2, 1, 256>}, {pipeline_mode = #tpu.pipeline_mode<synchronous>, transform_indices = @transform_7, window_bounds = array<i64: 256, 128>}, {pipeline_mode = #tpu.pipeline_mode<synchronous>, transform_indices = @transform_8, window_bounds = array<i64: 128, 128>}, {pipeline_mode = #tpu.pipeline_mode<synchronous>, transform_indices = @transform_9, window_bounds = array<i64: 128, 128>}, {pipeline_mode = #tpu.pipeline_mode<synchronous>, transform_indices = @transform_10, window_bounds = array<i64: 1, 128>}, {transform_indices = @transform_11, window_bounds = array<i64: 8, 128>}]} {
    %c0 = arith.constant 0 : index
    %c0_0 = arith.constant 0 : index
    %0 = vector.load %arg1[%c0, %c0_0] : memref<8x256xf32, #tpu.memory_space<vmem>>, vector<8x256xf32>
    %1 = arith.truncf %0 : vector<8x256xf32> to vector<8x256xbf16>
    %c0_1 = arith.constant 0 : index
    %c0_2 = arith.constant 0 : index
    %c0_3 = arith.constant 0 : index
    %2 = vector.load %arg4[%c0_1, %c0_2, %c0_3] : memref<2x256x128xbf16, #tpu.memory_space<vmem>>, vector<1x256x128xbf16>
    %3 = vector.shape_cast %2 : vector<1x256x128xbf16> to vector<256x128xbf16>
    %cst = arith.constant dense<0.000000e+00> : vector<8x128xf32>
    %4 = tpu.matmul %1, %3, %cst {dimension_numbers = #tpu.dot_dimension_numbers<[1], [0], [0], [1], [0, 0, 1, 1], [], []>} : vector<8x256xbf16>, vector<256x128xbf16>, vector<8x128xf32> -> vector<8x128xf32>
    %c0_4 = arith.constant 0 : index
    %c0_5 = arith.constant 0 : index
    %c0_6 = arith.constant 0 : index
    %5 = vector.load %arg5[%c0_4, %c0_5, %c0_6] : memref<2x1x128xf32, #tpu.memory_space<vmem>>, vector<1x1x128xf32>
    %6 = vector.shape_cast %5 : vector<1x1x128xf32> to vector<1x128xf32>
    %7 = vector.broadcast %6 : vector<1x128xf32> to vector<8x128xf32>
    %8 = arith.addf %4, %7 : vector<8x128xf32>
    %cst_7 = arith.constant 5.000000e-01 : f32
    %9 = vector.broadcast %cst_7 : f32 to vector<8x128xf32>
    %10 = arith.mulf %9, %8 : vector<8x128xf32>
    %cst_8 = arith.constant 2.000000e+00 : f32
    %11 = math.sqrt %cst_8 : f32
    %cst_9 = arith.constant 1.000000e+00 : f32
    %12 = arith.divf %cst_9, %11 : f32
    %13 = vector.broadcast %12 : f32 to vector<8x128xf32>
    %14 = arith.mulf %8, %13 : vector<8x128xf32>
    %15 = math.erf %14 : vector<8x128xf32>
    %cst_10 = arith.constant 1.000000e+00 : f32
    %16 = vector.broadcast %cst_10 : f32 to vector<8x128xf32>
    %17 = arith.addf %16, %15 : vector<8x128xf32>
    %18 = arith.mulf %10, %17 : vector<8x128xf32>
    %19 = arith.truncf %18 : vector<8x128xf32> to vector<8x128xbf16>
    %c0_11 = arith.constant 0 : index
    %c0_12 = arith.constant 0 : index
    %c0_13 = arith.constant 0 : index
    %20 = vector.load %arg6[%c0_11, %c0_12, %c0_13] : memref<2x128x256xbf16, #tpu.memory_space<vmem>>, vector<1x128x256xbf16>
    %21 = vector.shape_cast %20 : vector<1x128x256xbf16> to vector<128x256xbf16>
    %cst_14 = arith.constant dense<0.000000e+00> : vector<8x256xf32>
    %22 = tpu.matmul %19, %21, %cst_14 {dimension_numbers = #tpu.dot_dimension_numbers<[1], [0], [0], [1], [0, 0, 1, 1], [], []>} : vector<8x128xbf16>, vector<128x256xbf16>, vector<8x256xf32> -> vector<8x256xf32>
    %c0_15 = arith.constant 0 : index
    %c0_16 = arith.constant 0 : index
    %c0_17 = arith.constant 0 : index
    %23 = vector.load %arg7[%c0_15, %c0_16, %c0_17] : memref<2x1x256xf32, #tpu.memory_space<vmem>>, vector<1x1x256xf32>
    %24 = vector.shape_cast %23 : vector<1x1x256xf32> to vector<1x256xf32>
    %25 = vector.broadcast %24 : vector<1x256xf32> to vector<8x256xf32>
    %26 = arith.addf %22, %25 : vector<8x256xf32>
    %27 = arith.addf %0, %26 : vector<8x256xf32>
    %28 = arith.truncf %27 : vector<8x256xf32> to vector<8x256xbf16>
    %c1 = arith.constant 1 : index
    %c0_18 = arith.constant 0 : index
    %c0_19 = arith.constant 0 : index
    %29 = vector.load %arg4[%c1, %c0_18, %c0_19] : memref<2x256x128xbf16, #tpu.memory_space<vmem>>, vector<1x256x128xbf16>
    %30 = vector.shape_cast %29 : vector<1x256x128xbf16> to vector<256x128xbf16>
    %cst_20 = arith.constant dense<0.000000e+00> : vector<8x128xf32>
    %31 = tpu.matmul %28, %30, %cst_20 {dimension_numbers = #tpu.dot_dimension_numbers<[1], [0], [0], [1], [0, 0, 1, 1], [], []>} : vector<8x256xbf16>, vector<256x128xbf16>, vector<8x128xf32> -> vector<8x128xf32>
    %c1_21 = arith.constant 1 : index
    %c0_22 = arith.constant 0 : index
    %c0_23 = arith.constant 0 : index
    %32 = vector.load %arg5[%c1_21, %c0_22, %c0_23] : memref<2x1x128xf32, #tpu.memory_space<vmem>>, vector<1x1x128xf32>
    %33 = vector.shape_cast %32 : vector<1x1x128xf32> to vector<1x128xf32>
    %34 = vector.broadcast %33 : vector<1x128xf32> to vector<8x128xf32>
    %35 = arith.addf %31, %34 : vector<8x128xf32>
    %cst_24 = arith.constant 5.000000e-01 : f32
    %36 = vector.broadcast %cst_24 : f32 to vector<8x128xf32>
    %37 = arith.mulf %36, %35 : vector<8x128xf32>
    %cst_25 = arith.constant 2.000000e+00 : f32
    %38 = math.sqrt %cst_25 : f32
    %cst_26 = arith.constant 1.000000e+00 : f32
    %39 = arith.divf %cst_26, %38 : f32
    %40 = vector.broadcast %39 : f32 to vector<8x128xf32>
    %41 = arith.mulf %35, %40 : vector<8x128xf32>
    %42 = math.erf %41 : vector<8x128xf32>
    %cst_27 = arith.constant 1.000000e+00 : f32
    %43 = vector.broadcast %cst_27 : f32 to vector<8x128xf32>
    %44 = arith.addf %43, %42 : vector<8x128xf32>
    %45 = arith.mulf %37, %44 : vector<8x128xf32>
    %46 = arith.truncf %45 : vector<8x128xf32> to vector<8x128xbf16>
    %c1_28 = arith.constant 1 : index
    %c0_29 = arith.constant 0 : index
    %c0_30 = arith.constant 0 : index
    %47 = vector.load %arg6[%c1_28, %c0_29, %c0_30] : memref<2x128x256xbf16, #tpu.memory_space<vmem>>, vector<1x128x256xbf16>
    %48 = vector.shape_cast %47 : vector<1x128x256xbf16> to vector<128x256xbf16>
    %cst_31 = arith.constant dense<0.000000e+00> : vector<8x256xf32>
    %49 = tpu.matmul %46, %48, %cst_31 {dimension_numbers = #tpu.dot_dimension_numbers<[1], [0], [0], [1], [0, 0, 1, 1], [], []>} : vector<8x128xbf16>, vector<128x256xbf16>, vector<8x256xf32> -> vector<8x256xf32>
    %c1_32 = arith.constant 1 : index
    %c0_33 = arith.constant 0 : index
    %c0_34 = arith.constant 0 : index
    %50 = vector.load %arg7[%c1_32, %c0_33, %c0_34] : memref<2x1x256xf32, #tpu.memory_space<vmem>>, vector<1x1x256xf32>
    %51 = vector.shape_cast %50 : vector<1x1x256xf32> to vector<1x256xf32>
    %52 = vector.broadcast %51 : vector<1x256xf32> to vector<8x256xf32>
    %53 = arith.addf %49, %52 : vector<8x256xf32>
    %54 = arith.addf %27, %53 : vector<8x256xf32>
    %55 = arith.truncf %54 : vector<8x256xf32> to vector<8x256xbf16>
    %c0_35 = arith.constant 0 : index
    %c0_36 = arith.constant 0 : index
    %56 = vector.load %arg8[%c0_35, %c0_36] : memref<256x128xbf16, #tpu.memory_space<vmem>>, vector<256x128xbf16>
    %cst_37 = arith.constant dense<0.000000e+00> : vector<8x128xf32>
    %57 = tpu.matmul %55, %56, %cst_37 {dimension_numbers = #tpu.dot_dimension_numbers<[1], [0], [0], [1], [0, 0, 1, 1], [], []>} : vector<8x256xbf16>, vector<256x128xbf16>, vector<8x128xf32> -> vector<8x128xf32>
    %c0_38 = arith.constant 0 : index
    %c0_39 = arith.constant 0 : index
    %58 = vector.load %arg2[%c0_38, %c0_39] : memref<8x128xf32, #tpu.memory_space<vmem>>, vector<8x128xf32>
    %59 = arith.truncf %58 : vector<8x128xf32> to vector<8x128xbf16>
    %c0_40 = arith.constant 0 : index
    %c0_41 = arith.constant 0 : index
    %60 = vector.load %arg9[%c0_40, %c0_41] : memref<128x128xbf16, #tpu.memory_space<vmem>>, vector<128x128xbf16>
    %cst_42 = arith.constant dense<0.000000e+00> : vector<8x128xf32>
    %61 = tpu.matmul %59, %60, %cst_42 {dimension_numbers = #tpu.dot_dimension_numbers<[1], [0], [0], [1], [0, 0, 1, 1], [], []>} : vector<8x128xbf16>, vector<128x128xbf16>, vector<8x128xf32> -> vector<8x128xf32>
    %62 = arith.addf %57, %61 : vector<8x128xf32>
    %c0_43 = arith.constant 0 : index
    %c0_44 = arith.constant 0 : index
    %63 = vector.load %arg3[%c0_43, %c0_44] : memref<8x128xf32, #tpu.memory_space<vmem>>, vector<8x128xf32>
    %64 = arith.truncf %63 : vector<8x128xf32> to vector<8x128xbf16>
    %c0_45 = arith.constant 0 : index
    %c0_46 = arith.constant 0 : index
    %65 = vector.load %arg10[%c0_45, %c0_46] : memref<128x128xbf16, #tpu.memory_space<vmem>>, vector<128x128xbf16>
    %cst_47 = arith.constant dense<0.000000e+00> : vector<8x128xf32>
    %66 = tpu.matmul %64, %65, %cst_47 {dimension_numbers = #tpu.dot_dimension_numbers<[1], [0], [0], [1], [0, 0, 1, 1], [], []>} : vector<8x128xbf16>, vector<128x128xbf16>, vector<8x128xf32> -> vector<8x128xf32>
    %67 = arith.addf %62, %66 : vector<8x128xf32>
    %c0_48 = arith.constant 0 : index
    %c0_49 = arith.constant 0 : index
    %68 = vector.load %arg11[%c0_48, %c0_49] : memref<1x128xf32, #tpu.memory_space<vmem>>, vector<1x128xf32>
    %69 = vector.broadcast %68 : vector<1x128xf32> to vector<8x128xf32>
    %70 = arith.addf %67, %69 : vector<8x128xf32>
    %c0_50 = arith.constant 0 : index
    %c0_51 = arith.constant 0 : index
    %71 = vector.load %arg12[%c0_50, %c0_51] : memref<8x128xf32, #tpu.memory_space<vmem>>, vector<8x128xf32>
    tpu.vector_store %arg12[%c0_50, %c0_51], %70 {strides = array<i32>} : memref<8x128xf32, #tpu.memory_space<vmem>>, vector<8x128xf32>,
    return
  }
  func.func @transform_0(%arg0: i32) -> (i32, i32) {
    %c0_i32 = arith.constant 0 : i32
    %c0_i32_0 = arith.constant 0 : i32
    return %arg0, %c0_i32 : i32, i32
  }
  func.func @transform_1(%arg0: i32) -> (i32, i32) {
    %c0_i32 = arith.constant 0 : i32
    %c0_i32_0 = arith.constant 0 : i32
    return %arg0, %c0_i32 : i32, i32
  }
  func.func @transform_2(%arg0: i32) -> (i32, i32) {
    %c0_i32 = arith.constant 0 : i32
    %c0_i32_0 = arith.constant 0 : i32
    return %arg0, %c0_i32 : i32, i32
  }
  func.func @transform_3(%arg0: i32) -> (i32, i32, i32) {
    %c0_i32 = arith.constant 0 : i32
    %c0_i32_0 = arith.constant 0 : i32
    %c0_i32_1 = arith.constant 0 : i32
    %c0_i32_2 = arith.constant 0 : i32
    return %c0_i32, %c0_i32_0, %c0_i32_1 : i32, i32, i32
  }
  func.func @transform_4(%arg0: i32) -> (i32, i32, i32) {
    %c0_i32 = arith.constant 0 : i32
    %c0_i32_0 = arith.constant 0 : i32
    %c0_i32_1 = arith.constant 0 : i32
    %c0_i32_2 = arith.constant 0 : i32
    return %c0_i32, %c0_i32_0, %c0_i32_1 : i32, i32, i32
  }
  func.func @transform_5(%arg0: i32) -> (i32, i32, i32) {
    %c0_i32 = arith.constant 0 : i32
    %c0_i32_0 = arith.constant 0 : i32
    %c0_i32_1 = arith.constant 0 : i32
    %c0_i32_2 = arith.constant 0 : i32
    return %c0_i32, %c0_i32_0, %c0_i32_1 : i32, i32, i32
  }
  func.func @transform_6(%arg0: i32) -> (i32, i32, i32) {
    %c0_i32 = arith.constant 0 : i32
    %c0_i32_0 = arith.constant 0 : i32
    %c0_i32_1 = arith.constant 0 : i32
    %c0_i32_2 = arith.constant 0 : i32
    return %c0_i32, %c0_i32_0, %c0_i32_1 : i32, i32, i32
  }
  func.func @transform_7(%arg0: i32) -> (i32, i32) {
    %c0_i32 = arith.constant 0 : i32
    %c0_i32_0 = arith.constant 0 : i32
    %c0_i32_1 = arith.constant 0 : i32
    return %c0_i32, %c0_i32_0 : i32, i32
  }
  func.func @transform_8(%arg0: i32) -> (i32, i32) {
    %c0_i32 = arith.constant 0 : i32
    %c0_i32_0 = arith.constant 0 : i32
    %c0_i32_1 = arith.constant 0 : i32
    return %c0_i32, %c0_i32_0 : i32, i32
  }
  func.func @transform_9(%arg0: i32) -> (i32, i32) {
    %c0_i32 = arith.constant 0 : i32
    %c0_i32_0 = arith.constant 0 : i32
    %c0_i32_1 = arith.constant 0 : i32
    return %c0_i32, %c0_i32_0 : i32, i32
  }
  func.func @transform_10(%arg0: i32) -> (i32, i32) {
    %c0_i32 = arith.constant 0 : i32
    %c0_i32_0 = arith.constant 0 : i32
    %c0_i32_1 = arith.constant 0 : i32
    return %c0_i32, %c0_i32_0 : i32, i32
  }
  func.func @transform_11(%arg0: i32) -> (i32, i32) {
    %c0_i32 = arith.constant 0 : i32
    %c0_i32_0 = arith.constant 0 : i32
    return %arg0, %c0_i32 : i32, i32
  }
}

</mosaic_0001>

<llo_original>
// kernel: tpu_custom_call.1
$region0: #{tpu_custom_call.1}
  #allocation0 [shape = 'u32[]', space=smem, size = 0x4, offset = 0x4, fixed_abs, tag = 'smem constant byte address 0x4 - core index']
  #allocation1 [shape = 'u32[144,128]{1,0:T(1,128)}', space=vmem, size = 0x12000, scoped, tag = 'internal scratch']
  %s0 = inlined_call_operand.hbm [shape: f32[8,256], index: 0, kind: input, shape index: {}]
  %s1 = inlined_call_operand.hbm [shape: f32[8,128], index: 1, kind: input, shape index: {}]
  %s2 = inlined_call_operand.hbm [shape: f32[8,128], index: 2, kind: input, shape index: {}]
  %s3 = inlined_call_operand.hbm [shape: bf16[2,256,128], index: 3, kind: input, shape index: {}]
  %s4 = inlined_call_operand.vmem [shape: f32[2,1,128], index: 4, kind: input, shape index: {}]
  %s5 = inlined_call_operand.hbm [shape: bf16[2,128,256], index: 5, kind: input, shape index: {}]
  %s6 = inlined_call_operand.vmem [shape: f32[2,1,256], index: 6, kind: input, shape index: {}]
  %s7 = inlined_call_operand.hbm [shape: bf16[256,128], index: 7, kind: input, shape index: {}]
  %s8 = inlined_call_operand.hbm [shape: bf16[128,128], index: 8, kind: input, shape index: {}]
  %s9 = inlined_call_operand.hbm [shape: bf16[128,128], index: 9, kind: input, shape index: {}]
  %s10 = inlined_call_operand.vmem [shape: f32[1,128], index: 10, kind: input, shape index: {}]
  %s11 = inlined_call_operand.hbm [shape: f32[8,128], index: 11, kind: output, shape index: {}]
  %s12 = sld [smem:[#allocation0]]
  $region86: #{tpu_custom_call.1} parent=0
    _
  %s14 = ssub.s32 1, %s12
  %s15 = scalar_select 0, %s14, %s12
  $region1: #{tpu_custom_call.1} parent=0
    #allocation2 [shape = 'u8[8192]{0}', space=vmem, size = 0x2000, scoped, tag = 'input window, operand 0, single buffered']
    #allocation3 [shape = 's32[1]{0}', space=sflag, size = 0x4, scoped, tag = 'scoped memory for tpu_custom_call.1']
    #allocation4 [shape = 's32[1]{0}', space=sflag, size = 0x4, scoped, tag = 'scoped memory for tpu_custom_call.1']
    #allocation5 [shape = 'u8[4096]{0}', space=vmem, size = 0x1000, scoped, tag = 'input window, operand 1, single buffered']
    #allocation6 [shape = 's32[1]{0}', space=sflag, size = 0x4, scoped, tag = 'scoped memory for tpu_custom_call.1']
    #allocation7 [shape = 'u8[4096]{0}', space=vmem, size = 0x1000, scoped, tag = 'input window, operand 2, single buffered']
    #allocation8 [shape = 'u8[131072]{0}', space=vmem, size = 0x20000, scoped, tag = 'input window, operand 3, single buffered']
    #allocation9 [shape = 's32[1]{0}', space=sflag, size = 0x4, scoped, tag = 'scoped memory for tpu_custom_call.1']
    #allocation10 [shape = 'u8[131072]{0}', space=vmem, size = 0x20000, scoped, tag = 'input window, operand 5, single buffered']
    #allocation11 [shape = 'u8[65536]{0}', space=vmem, size = 0x10000, scoped, tag = 'input window, operand 7, single buffered']
    #allocation12 [shape = 's32[1]{0}', space=sflag, size = 0x4, scoped, tag = 'scoped memory for tpu_custom_call.1']
    #allocation13 [shape = 'u8[32768]{0}', space=vmem, size = 0x8000, scoped, tag = 'input window, operand 8, single buffered']
    #allocation14 [shape = 'u8[32768]{0}', space=vmem, size = 0x8000, scoped, tag = 'input window, operand 9, single buffered']
    #allocation15 [shape = 's32[1]{0}', space=sflag, size = 0x4, scoped, tag = 'scoped memory for tpu_custom_call.1']
    #allocation16 [shape = 'u8[4096]{0}', space=vmem, size = 0x1000, scoped, tag = 'output window, operand 0, single buffered']
    %16 = vsyncpa [#allocation3], 0
    %17 = vsyncpa [#allocation6], 0
    %18 = vsyncpa [#allocation9], 0
    %19 = vsyncpa [#allocation12], 0
    %20 = vsyncpa [#allocation15], 0
    %21 = vsyncpa [#allocation4], 0
    // Predicated region
    $region2: #{tpu_custom_call.1} parent=1 // pred_check
      _
    $region3: #{tpu_custom_call.1} parent=1 // pred_check_branch
      %23 = sbr.rel (0) target = $region5
    $region4: #{tpu_custom_call.1} parent=1 // pred_region
      %s25 = ssub.s32 256, 256
      %26 = vsyncadd [#allocation3], %s25
      %s28 = sshll.u32 [#allocation2], 4
      %s29 = int_to_ptr.vmem [resolvable:$true] %s28
      %31 = dma.hbm_to_vmem [thread:$0]  %s0, 256, %s29, [#allocation3]
    $region5: #{tpu_custom_call.1} parent=1 // pred_fallthru
      _
    // Predicated region
    $region6: #{tpu_custom_call.1} parent=1 // pred_check
      _
    $region7: #{tpu_custom_call.1} parent=1 // pred_check_branch
      %33 = sbr.rel (0) target = $region9
    $region8: #{tpu_custom_call.1} parent=1 // pred_region
      %s35 = ssub.s32 128, 128
      %36 = vsyncadd [#allocation6], %s35
      %s38 = sshll.u32 [#allocation5], 4
      %s39 = int_to_ptr.vmem [resolvable:$true] %s38
      %41 = dma.hbm_to_vmem [thread:$0]  %s1, 128, %s39, [#allocation6]
    $region9: #{tpu_custom_call.1} parent=1 // pred_fallthru
      _
    // Predicated region
    $region10: #{tpu_custom_call.1} parent=1 // pred_check
      _
    $region11: #{tpu_custom_call.1} parent=1 // pred_check_branch
      %43 = sbr.rel (0) target = $region13
    $region12: #{tpu_custom_call.1} parent=1 // pred_region
      %s45 = ssub.s32 128, 128
      %46 = vsyncadd [#allocation6], %s45
      %s48 = sshll.u32 [#allocation7], 4
      %s49 = int_to_ptr.vmem [resolvable:$true] %s48
      %51 = dma.hbm_to_vmem [thread:$0]  %s2, 128, %s49, [#allocation6]
    $region13: #{tpu_custom_call.1} parent=1 // pred_fallthru
      _
    // Predicated region
    $region14: #{tpu_custom_call.1} parent=1 // pred_check
      _
    $region15: #{tpu_custom_call.1} parent=1 // pred_check_branch
      %53 = sbr.rel (0) target = $region17
    $region16: #{tpu_custom_call.1} parent=1 // pred_region
      %s55 = ssub.s32 4096, 4096
      %56 = vsyncadd [#allocation9], %s55
      %s57 = sshll.u32 [#allocation8], 4
      %s58 = int_to_ptr.vmem [resolvable:$true] %s57
      %63 = dma.hbm_to_vmem [thread:$0]  %s3, 4096, %s58, [#allocation9], 64, 64, 4
    $region17: #{tpu_custom_call.1} parent=1 // pred_fallthru
      _
    // Predicated region
    $region18: #{tpu_custom_call.1} parent=1 // pred_check
      _
    $region19: #{tpu_custom_call.1} parent=1 // pred_check_branch
      %65 = sbr.rel (0) target = $region21
    $region20: #{tpu_custom_call.1} parent=1 // pred_region
      _
    $region21: #{tpu_custom_call.1} parent=1 // pred_fallthru
      _
    // Predicated region
    $region22: #{tpu_custom_call.1} parent=1 // pred_check
      _
    $region23: #{tpu_custom_call.1} parent=1 // pred_check_branch
      %67 = sbr.rel (0) target = $region25
    $region24: #{tpu_custom_call.1} parent=1 // pred_region
      %s69 = ssub.s32 4096, 4096
      %70 = vsyncadd [#allocation9], %s69
      %s71 = sshll.u32 [#allocation10], 4
      %s72 = int_to_ptr.vmem [resolvable:$true] %s71
      %77 = dma.hbm_to_vmem [thread:$0]  %s5, 4096, %s72, [#allocation9], 128, 128, 8
    $region25: #{tpu_custom_call.1} parent=1 // pred_fallthru
      _
    // Predicated region
    $region26: #{tpu_custom_call.1} parent=1 // pred_check
      _
    $region27: #{tpu_custom_call.1} parent=1 // pred_check_branch
      %79 = sbr.rel (0) target = $region29
    $region28: #{tpu_custom_call.1} parent=1 // pred_region
      _
    $region29: #{tpu_custom_call.1} parent=1 // pred_fallthru
      _
    // Predicated region
    $region30: #{tpu_custom_call.1} parent=1 // pred_check
      _
    $region31: #{tpu_custom_call.1} parent=1 // pred_check_branch
      %81 = sbr.rel (0) target = $region33
    $region32: #{tpu_custom_call.1} parent=1 // pred_region
      %s83 = ssub.s32 2048, 2048
      %84 = vsyncadd [#allocation12], %s83
      %s85 = sshll.u32 [#allocation11], 4
      %s86 = int_to_ptr.vmem [resolvable:$true] %s85
      %91 = dma.hbm_to_vmem [thread:$0]  %s7, 2048, %s86, [#allocation12], 64, 64, 4
    $region33: #{tpu_custom_call.1} parent=1 // pred_fallthru
      _
    // Predicated region
    $region34: #{tpu_custom_call.1} parent=1 // pred_check
      _
    $region35: #{tpu_custom_call.1} parent=1 // pred_check_branch
      %93 = sbr.rel (0) target = $region37
    $region36: #{tpu_custom_call.1} parent=1 // pred_region
      %s95 = ssub.s32 1024, 1024
      %96 = vsyncadd [#allocation12], %s95
      %s97 = sshll.u32 [#allocation13], 4
      %s98 = int_to_ptr.vmem [resolvable:$true] %s97
      %103 = dma.hbm_to_vmem [thread:$0]  %s8, 1024, %s98, [#allocation12], 64, 64, 4
    $region37: #{tpu_custom_call.1} parent=1 // pred_fallthru
      _
    // Predicated region
    $region38: #{tpu_custom_call.1} parent=1 // pred_check
      _
    $region39: #{tpu_custom_call.1} parent=1 // pred_check_branch
      %105 = sbr.rel (0) target = $region41
    $region40: #{tpu_custom_call.1} parent=1 // pred_region
      %s107 = ssub.s32 1024, 1024
      %108 = vsyncadd [#allocation15], %s107
      %s109 = sshll.u32 [#allocation14], 4
      %s110 = int_to_ptr.vmem [resolvable:$true] %s109
      %115 = dma.hbm_to_vmem [thread:$0]  %s9, 1024, %s110, [#allocation15], 64, 64, 4
    $region41: #{tpu_custom_call.1} parent=1 // pred_fallthru
      _
    // Predicated region
    $region42: #{tpu_custom_call.1} parent=1 // pred_check
      _
    $region43: #{tpu_custom_call.1} parent=1 // pred_check_branch
      %117 = sbr.rel (0) target = $region45
    $region44: #{tpu_custom_call.1} parent=1 // pred_region
      _
    $region45: #{tpu_custom_call.1} parent=1 // pred_fallthru
      _
    // Predicated region
    $region46: #{tpu_custom_call.1} parent=1 // pred_check
      _
    $region47: #{tpu_custom_call.1} parent=1 // pred_check_branch
      %119 = sbr.rel (0) target = $region49
    $region48: #{tpu_custom_call.1} parent=1 // pred_region
      %120 = dma.done [#allocation3], 256
    $region49: #{tpu_custom_call.1} parent=1 // pred_fallthru
      _
    // Predicated region
    $region50: #{tpu_custom_call.1} parent=1 // pred_check
      _
    $region51: #{tpu_custom_call.1} parent=1 // pred_check_branch
      %122 = sbr.rel (0) target = $region53
    $region52: #{tpu_custom_call.1} parent=1 // pred_region
      %123 = dma.done [#allocation6], 128
    $region53: #{tpu_custom_call.1} parent=1 // pred_fallthru
      _
    // Predicated region
    $region54: #{tpu_custom_call.1} parent=1 // pred_check
      _
    $region55: #{tpu_custom_call.1} parent=1 // pred_check_branch
      %125 = sbr.rel (0) target = $region57
    $region56: #{tpu_custom_call.1} parent=1 // pred_region
      %126 = dma.done [#allocation6], 128
    $region57: #{tpu_custom_call.1} parent=1 // pred_fallthru
      _
    // Predicated region
    $region58: #{tpu_custom_call.1} parent=1 // pred_check
      _
    $region59: #{tpu_custom_call.1} parent=1 // pred_check_branch
      %128 = sbr.rel (0) target = $region61
    $region60: #{tpu_custom_call.1} parent=1 // pred_region
      %129 = dma.done [#allocation9], 4096
    $region61: #{tpu_custom_call.1} parent=1 // pred_fallthru
      _
    // Predicated region
    $region62: #{tpu_custom_call.1} parent=1 // pred_check
      _
    $region63: #{tpu_custom_call.1} parent=1 // pred_check_branch
      %131 = sbr.rel (0) target = $region65
    $region64: #{tpu_custom_call.1} parent=1 // pred_region
      %132 = dma.done [#allocation9], 4096
    $region65: #{tpu_custom_call.1} parent=1 // pred_fallthru
      _
    // Predicated region
    $region66: #{tpu_custom_call.1} parent=1 // pred_check
      _
    $region67: #{tpu_custom_call.1} parent=1 // pred_check_branch
      %134 = sbr.rel (0) target = $region69
    $region68: #{tpu_custom_call.1} parent=1 // pred_region
      %135 = dma.done [#allocation12], 2048
    $region69: #{tpu_custom_call.1} parent=1 // pred_fallthru
      _
    // Predicated region
    $region70: #{tpu_custom_call.1} parent=1 // pred_check
      _
    $region71: #{tpu_custom_call.1} parent=1 // pred_check_branch
      %137 = sbr.rel (0) target = $region73
    $region72: #{tpu_custom_call.1} parent=1 // pred_region
      %138 = dma.done [#allocation12], 1024
    $region73: #{tpu_custom_call.1} parent=1 // pred_fallthru
      _
    // Predicated region
    $region74: #{tpu_custom_call.1} parent=1 // pred_check
      _
    $region75: #{tpu_custom_call.1} parent=1 // pred_check_branch
      %140 = sbr.rel (0) target = $region77
    $region76: #{tpu_custom_call.1} parent=1 // pred_region
      %141 = dma.done [#allocation15], 1024
    $region77: #{tpu_custom_call.1} parent=1 // pred_fallthru
      _
    %v143 = vld [vmem:[#allocation2] sm:$0xff]
    %v144 = vld [vmem:[#allocation2 + $0x8] sm:$0xff]
    %v145 = vpack.c.bf16 %v143, %v143
    %v146 = vpack.c.bf16 %v144, %v144
    %v147 = vld [vmem:[#allocation8] sm:$0xf]
    %v148 = vld [vmem:[#allocation8 + $0x4] sm:$0xf]
    %v149 = vld [vmem:[#allocation8 + $0x8] sm:$0xf]
    %v150 = vld [vmem:[#allocation8 + $0xc] sm:$0xf]
    %v151 = vld [vmem:[#allocation8 + $0x10] sm:$0xf]
    %v152 = vld [vmem:[#allocation8 + $0x14] sm:$0xf]
    %v153 = vld [vmem:[#allocation8 + $0x18] sm:$0xf]
    %v154 = vld [vmem:[#allocation8 + $0x1c] sm:$0xf]
    %v155 = vld [vmem:[#allocation8 + $0x20] sm:$0xf]
    %v156 = vld [vmem:[#allocation8 + $0x24] sm:$0xf]
    %v157 = vld [vmem:[#allocation8 + $0x28] sm:$0xf]
    %v158 = vld [vmem:[#allocation8 + $0x2c] sm:$0xf]
    %v159 = vld [vmem:[#allocation8 + $0x30] sm:$0xf]
    %v160 = vld [vmem:[#allocation8 + $0x34] sm:$0xf]
    %v161 = vld [vmem:[#allocation8 + $0x38] sm:$0xf]
    %v162 = vld [vmem:[#allocation8 + $0x3c] sm:$0xf]
    %v163 = vld [vmem:[#allocation8 + $0x40] sm:$0xf]
    %v164 = vld [vmem:[#allocation8 + $0x44] sm:$0xf]
    %v165 = vld [vmem:[#allocation8 + $0x48] sm:$0xf]
    %v166 = vld [vmem:[#allocation8 + $0x4c] sm:$0xf]
    %v167 = vld [vmem:[#allocation8 + $0x50] sm:$0xf]
    %v168 = vld [vmem:[#allocation8 + $0x54] sm:$0xf]
    %v169 = vld [vmem:[#allocation8 + $0x58] sm:$0xf]
    %v170 = vld [vmem:[#allocation8 + $0x5c] sm:$0xf]
    %v171 = vld [vmem:[#allocation8 + $0x60] sm:$0xf]
    %v172 = vld [vmem:[#allocation8 + $0x64] sm:$0xf]
    %v173 = vld [vmem:[#allocation8 + $0x68] sm:$0xf]
    %v174 = vld [vmem:[#allocation8 + $0x6c] sm:$0xf]
    %v175 = vld [vmem:[#allocation8 + $0x70] sm:$0xf]
    %v176 = vld [vmem:[#allocation8 + $0x74] sm:$0xf]
    %v177 = vld [vmem:[#allocation8 + $0x78] sm:$0xf]
    %v178 = vld [vmem:[#allocation8 + $0x7c] sm:$0xf]
    %v179 = vld [vmem:[%s4] sm:$0x1]
    %v181 = vlaneseq
    %v182 = vshrl.u32 %v181, 7
    %v183 = vsub.s32 0, %v182
    %v184 = vrot.slane %v179, %v183
    %v218 = vunpack.c.l.b16 %v147
    %v219 = vunpack.c.l.b16 %v148
    %v220 = vunpack.c.l.b16 %v149
    %v221 = vunpack.c.l.b16 %v150
    %v222 = vunpack.c.l.b16 %v151
    %v223 = vunpack.c.l.b16 %v152
    %v224 = vunpack.c.l.b16 %v153
    %v225 = vunpack.c.l.b16 %v154
    %v226 = vunpack.c.l.b16 %v155
    %v227 = vunpack.c.l.b16 %v156
    %v228 = vunpack.c.l.b16 %v157
    %v229 = vunpack.c.l.b16 %v158
    %v230 = vunpack.c.l.b16 %v159
    %v231 = vunpack.c.l.b16 %v160
    %v232 = vunpack.c.l.b16 %v161
    %v233 = vunpack.c.l.b16 %v162
    %v234 = vunpack.c.l.b16 %v163
    %v235 = vunpack.c.l.b16 %v164
    %v236 = vunpack.c.l.b16 %v165
    %v237 = vunpack.c.l.b16 %v166
    %v238 = vunpack.c.l.b16 %v167
    %v239 = vunpack.c.l.b16 %v168
    %v240 = vunpack.c.l.b16 %v169
    %v241 = vunpack.c.l.b16 %v170
    %v242 = vunpack.c.l.b16 %v171
    %v243 = vunpack.c.l.b16 %v172
    %v244 = vunpack.c.l.b16 %v173
    %v245 = vunpack.c.l.b16 %v174
    %v246 = vunpack.c.l.b16 %v175
    %v247 = vunpack.c.l.b16 %v176
    %v248 = vunpack.c.l.b16 %v177
    %v249 = vunpack.c.l.b16 %v178
    %v250 = vpack.c.b16 %v219, %v218
    %v251 = vpack.c.b16 %v221, %v220
    %v252 = vpack.c.b16 %v223, %v222
    %v253 = vpack.c.b16 %v225, %v224
    %v254 = vpack.c.b16 %v227, %v226
    %v255 = vpack.c.b16 %v229, %v228
    %v256 = vpack.c.b16 %v231, %v230
    %v257 = vpack.c.b16 %v233, %v232
    %v258 = vpack.c.b16 %v235, %v234
    %v259 = vpack.c.b16 %v237, %v236
    %v260 = vpack.c.b16 %v239, %v238
    %v261 = vpack.c.b16 %v241, %v240
    %v262 = vpack.c.b16 %v243, %v242
    %v263 = vpack.c.b16 %v245, %v244
    %v264 = vpack.c.b16 %v247, %v246
    %v265 = vpack.c.b16 %v249, %v248
    %282 = vmatprep.subr.bf16.mxu0 0
    %283 = vmatpush1.bf16.msra.mxu0 %v250
    %284 = vmatprep.subr.bf16.mxu0 0
    %285 = vmatpush1.bf16.msra.mxu0 %v251
    %286 = vmatprep.subr.bf16.mxu0 0
    %287 = vmatpush1.bf16.msra.mxu0 %v252
    %288 = vmatprep.subr.bf16.mxu0 0
    %289 = vmatpush1.bf16.msra.mxu0 %v253
    %290 = vmatprep.subr.bf16.mxu0 0
    %291 = vmatpush1.bf16.msra.mxu0 %v254
    %292 = vmatprep.subr.bf16.mxu0 0
    %293 = vmatpush1.bf16.msra.mxu0 %v255
    %294 = vmatprep.subr.bf16.mxu0 0
    %295 = vmatpush1.bf16.msra.mxu0 %v256
    %296 = vmatprep.subr.bf16.mxu0 0
    %297 = vmatpush1.bf16.msra.mxu0 %v257
    %298 = vmatprep.subr.bf16.mxu0 0
    %299 = vmatpush1.bf16.msra.mxu0 %v258
    %300 = vmatprep.subr.bf16.mxu0 0
    %301 = vmatpush1.bf16.msra.mxu0 %v259
    %302 = vmatprep.subr.bf16.mxu0 0
    %303 = vmatpush1.bf16.msra.mxu0 %v260
    %304 = vmatprep.subr.bf16.mxu0 0
    %305 = vmatpush1.bf16.msra.mxu0 %v261
    %306 = vmatprep.subr.bf16.mxu0 0
    %307 = vmatpush1.bf16.msra.mxu0 %v262
    %308 = vmatprep.subr.bf16.mxu0 0
    %309 = vmatpush1.bf16.msra.mxu0 %v263
    %310 = vmatprep.subr.bf16.mxu0 0
    %311 = vmatpush1.bf16.msra.mxu0 %v264
    %312 = vmatprep.subr.bf16.mxu0 0
    %313 = vmatpush1.bf16.msra.mxu0 %v265
    %314 = vmatprep.mubr.bf16.mxu0 %v146
    %315 = vmatmul.mubr.bf16.gmra.mrb[0].mxu0 %v145
    %v316 = vpop.f32.mrb[0].mxu0
    %v317 = vadd.f32 %v184, %v316
    %v318 = vpop.f32.mrb[0].mxu0
    %v319 = vpop.f32.mrb[0].mxu0
    %v320 = vpop.f32.mrb[0].mxu0
    %321 = vdwg.mxu0
    %v322 = vmul.f32 %v317, 0.5
    %v323 = vmul.f32 %v317, 0.70710677
    %v324 = verf.f32.pop %v323
    %v325 = vadd.f32 %v324, 1.0
    %v326 = vmul.f32 %v322, %v325
    %v327 = vpack.c.bf16 %v326, %v326
    %v328 = vld [vmem:[#allocation10] sm:$0xff]
    %v329 = vld [vmem:[#allocation10 + $0x8] sm:$0xff]
    %v330 = vld [vmem:[#allocation10 + $0x10] sm:$0xff]
    %v331 = vld [vmem:[#allocation10 + $0x18] sm:$0xff]
    %v332 = vld [vmem:[#allocation10 + $0x20] sm:$0xff]
    %v333 = vld [vmem:[#allocation10 + $0x28] sm:$0xff]
    %v334 = vld [vmem:[#allocation10 + $0x30] sm:$0xff]
    %v335 = vld [vmem:[#allocation10 + $0x38] sm:$0xff]
    %v336 = vld [vmem:[#allocation10 + $0x40] sm:$0xff]
    %v337 = vld [vmem:[#allocation10 + $0x48] sm:$0xff]
    %v338 = vld [vmem:[#allocation10 + $0x50] sm:$0xff]
    %v339 = vld [vmem:[#allocation10 + $0x58] sm:$0xff]
    %v340 = vld [vmem:[#allocation10 + $0x60] sm:$0xff]
    %v341 = vld [vmem:[#allocation10 + $0x68] sm:$0xff]
    %v342 = vld [vmem:[#allocation10 + $0x70] sm:$0xff]
    %v343 = vld [vmem:[#allocation10 + $0x78] sm:$0xff]
    %v344 = vld [vmem:[%s6] sm:$0x3]
    %v346 = vlaneseq
    %v347 = vshrl.u32 %v346, 7
    %v348 = vsub.s32 0, %v347
    %v349 = vrot.slane %v344, %v348
    %v350 = vlaneseq
    %v351 = vshrl.u32 %v350, 7
    %v352 = vsub.s32 1, %v351
    %v353 = vrot.slane %v344, %v352
    %v372 = vunpack.c.l.b16 %v328
    %v373 = vunpack.c.h.b16 %v328
    %v374 = vunpack.c.l.b16 %v329
    %v375 = vunpack.c.h.b16 %v329
    %v376 = vunpack.c.l.b16 %v330
    %v377 = vunpack.c.h.b16 %v330
    %v378 = vunpack.c.l.b16 %v331
    %v379 = vunpack.c.h.b16 %v331
    %v380 = vunpack.c.l.b16 %v332
    %v381 = vunpack.c.h.b16 %v332
    %v382 = vunpack.c.l.b16 %v333
    %v383 = vunpack.c.h.b16 %v333
    %v384 = vunpack.c.l.b16 %v334
    %v385 = vunpack.c.h.b16 %v334
    %v386 = vunpack.c.l.b16 %v335
    %v387 = vunpack.c.h.b16 %v335
    %v388 = vunpack.c.l.b16 %v336
    %v389 = vunpack.c.h.b16 %v336
    %v390 = vunpack.c.l.b16 %v337
    %v391 = vunpack.c.h.b16 %v337
    %v392 = vunpack.c.l.b16 %v338
    %v393 = vunpack.c.h.b16 %v338
    %v394 = vunpack.c.l.b16 %v339
    %v395 = vunpack.c.h.b16 %v339
    %v396 = vunpack.c.l.b16 %v340
    %v397 = vunpack.c.h.b16 %v340
    %v398 = vunpack.c.l.b16 %v341
    %v399 = vunpack.c.h.b16 %v341
    %v400 = vunpack.c.l.b16 %v342
    %v401 = vunpack.c.h.b16 %v342
    %v402 = vunpack.c.l.b16 %v343
    %v403 = vunpack.c.h.b16 %v343
    %v404 = vpack.c.b16 %v374, %v372
    %v405 = vpack.c.b16 %v375, %v373
    %v406 = vpack.c.b16 %v378, %v376
    %v407 = vpack.c.b16 %v379, %v377
    %v408 = vpack.c.b16 %v382, %v380
    %v409 = vpack.c.b16 %v383, %v381
    %v410 = vpack.c.b16 %v386, %v384
    %v411 = vpack.c.b16 %v387, %v385
    %v412 = vpack.c.b16 %v390, %v388
    %v413 = vpack.c.b16 %v391, %v389
    %v414 = vpack.c.b16 %v394, %v392
    %v415 = vpack.c.b16 %v395, %v393
    %v416 = vpack.c.b16 %v398, %v396
    %v417 = vpack.c.b16 %v399, %v397
    %v418 = vpack.c.b16 %v402, %v400
    %v419 = vpack.c.b16 %v403, %v401
    %436 = vmatprep.subr.bf16.mxu0 %v405
    %437 = vmatpush1.bf16.msra.mxu0 %v404
    %438 = vmatprep.subr.bf16.mxu0 %v407
    %439 = vmatpush1.bf16.msra.mxu0 %v406
    %440 = vmatprep.subr.bf16.mxu0 %v409
    %441 = vmatpush1.bf16.msra.mxu0 %v408
    %442 = vmatprep.subr.bf16.mxu0 %v411
    %443 = vmatpush1.bf16.msra.mxu0 %v410
    %444 = vmatprep.subr.bf16.mxu0 %v413
    %445 = vmatpush1.bf16.msra.mxu0 %v412
    %446 = vmatprep.subr.bf16.mxu0 %v415
    %447 = vmatpush1.bf16.msra.mxu0 %v414
    %448 = vmatprep.subr.bf16.mxu0 %v417
    %449 = vmatpush1.bf16.msra.mxu0 %v416
    %450 = vmatprep.subr.bf16.mxu0 %v419
    %451 = vmatpush1.bf16.msra.mxu0 %v418
    %452 = vmatprep.subr.bf16.mxu0 0
    %453 = vmatpush1.bf16.msra.mxu0 0
    %454 = vmatprep.subr.bf16.mxu0 0
    %455 = vmatpush1.bf16.msra.mxu0 0
    %456 = vmatprep.subr.bf16.mxu0 0
    %457 = vmatpush1.bf16.msra.mxu0 0
    %458 = vmatprep.subr.bf16.mxu0 0
    %459 = vmatpush1.bf16.msra.mxu0 0
    %460 = vmatprep.subr.bf16.mxu0 0
    %461 = vmatpush1.bf16.msra.mxu0 0
    %462 = vmatprep.subr.bf16.mxu0 0
    %463 = vmatpush1.bf16.msra.mxu0 0
    %464 = vmatprep.subr.bf16.mxu0 0
    %465 = vmatpush1.bf16.msra.mxu0 0
    %466 = vmatprep.subr.bf16.mxu0 0
    %467 = vmatpush1.bf16.msra.mxu0 0
    %468 = vmatprep.mubr.bf16.mxu0 0
    %469 = vmatmul.mubr.bf16.gmra.mrb[0].mxu0 %v327
    %v470 = vpop.f32.mrb[0].mxu0
    %v471 = vadd.f32 %v349, %v470
    %v472 = vpop.f32.mrb[0].mxu0
    %v473 = vadd.f32 %v353, %v472
    %v474 = vpop.f32.mrb[0].mxu0
    %v475 = vpop.f32.mrb[0].mxu0
    %476 = vdwg.mxu0
    %v477 = vadd.f32 %v143, %v471
    %v478 = vadd.f32 %v144, %v473
    %v479 = vpack.c.bf16 %v477, %v477
    %v480 = vpack.c.bf16 %v478, %v478
    %s481 = scalar_lea.vmem [#allocation8], 128
    %v482 = vld [vmem:[%s481] sm:$0xf]
    %v483 = vld [vmem:[%s481 + $0x4] sm:$0xf]
    %v484 = vld [vmem:[%s481 + $0x8] sm:$0xf]
    %v485 = vld [vmem:[%s481 + $0xc] sm:$0xf]
    %v486 = vld [vmem:[%s481 + $0x10] sm:$0xf]
    %v487 = vld [vmem:[%s481 + $0x14] sm:$0xf]
    %v488 = vld [vmem:[%s481 + $0x18] sm:$0xf]
    %v489 = vld [vmem:[%s481 + $0x1c] sm:$0xf]
    %v490 = vld [vmem:[%s481 + $0x20] sm:$0xf]
    %v491 = vld [vmem:[%s481 + $0x24] sm:$0xf]
    %v492 = vld [vmem:[%s481 + $0x28] sm:$0xf]
    %v493 = vld [vmem:[%s481 + $0x2c] sm:$0xf]
    %v494 = vld [vmem:[%s481 + $0x30] sm:$0xf]
    %v495 = vld [vmem:[%s481 + $0x34] sm:$0xf]
    %v496 = vld [vmem:[%s481 + $0x38] sm:$0xf]
    %v497 = vld [vmem:[%s481 + $0x3c] sm:$0xf]
    %v498 = vld [vmem:[%s481 + $0x40] sm:$0xf]
    %v499 = vld [vmem:[%s481 + $0x44] sm:$0xf]
    %v500 = vld [vmem:[%s481 + $0x48] sm:$0xf]
    %v501 = vld [vmem:[%s481 + $0x4c] sm:$0xf]
    %v502 = vld [vmem:[%s481 + $0x50] sm:$0xf]
    %v503 = vld [vmem:[%s481 + $0x54] sm:$0xf]
    %v504 = vld [vmem:[%s481 + $0x58] sm:$0xf]
    %v505 = vld [vmem:[%s481 + $0x5c] sm:$0xf]
    %v506 = vld [vmem:[%s481 + $0x60] sm:$0xf]
    %v507 = vld [vmem:[%s481 + $0x64] sm:$0xf]
    %v508 = vld [vmem:[%s481 + $0x68] sm:$0xf]
    %v509 = vld [vmem:[%s481 + $0x6c] sm:$0xf]
    %v510 = vld [vmem:[%s481 + $0x70] sm:$0xf]
    %v511 = vld [vmem:[%s481 + $0x74] sm:$0xf]
    %v512 = vld [vmem:[%s481 + $0x78] sm:$0xf]
    %v513 = vld [vmem:[%s481 + $0x7c] sm:$0xf]
    %s514 = scalar_lea.vmem %s4, 1
    %v515 = vld [vmem:[%s514] sm:$0x1]
    %v517 = vlaneseq
    %v518 = vshrl.u32 %v517, 7
    %v519 = vsub.s32 0, %v518
    %v520 = vrot.slane %v515, %v519
    %v554 = vunpack.c.l.b16 %v482
    %v555 = vunpack.c.l.b16 %v483
    %v556 = vunpack.c.l.b16 %v484
    %v557 = vunpack.c.l.b16 %v485
    %v558 = vunpack.c.l.b16 %v486
    %v559 = vunpack.c.l.b16 %v487
    %v560 = vunpack.c.l.b16 %v488
    %v561 = vunpack.c.l.b16 %v489
    %v562 = vunpack.c.l.b16 %v490
    %v563 = vunpack.c.l.b16 %v491
    %v564 = vunpack.c.l.b16 %v492
    %v565 = vunpack.c.l.b16 %v493
    %v566 = vunpack.c.l.b16 %v494
    %v567 = vunpack.c.l.b16 %v495
    %v568 = vunpack.c.l.b16 %v496
    %v569 = vunpack.c.l.b16 %v497
    %v570 = vunpack.c.l.b16 %v498
    %v571 = vunpack.c.l.b16 %v499
    %v572 = vunpack.c.l.b16 %v500
    %v573 = vunpack.c.l.b16 %v501
    %v574 = vunpack.c.l.b16 %v502
    %v575 = vunpack.c.l.b16 %v503
    %v576 = vunpack.c.l.b16 %v504
    %v577 = vunpack.c.l.b16 %v505
    %v578 = vunpack.c.l.b16 %v506
    %v579 = vunpack.c.l.b16 %v507
    %v580 = vunpack.c.l.b16 %v508
    %v581 = vunpack.c.l.b16 %v509
    %v582 = vunpack.c.l.b16 %v510
    %v583 = vunpack.c.l.b16 %v511
    %v584 = vunpack.c.l.b16 %v512
    %v585 = vunpack.c.l.b16 %v513
    %v586 = vpack.c.b16 %v555, %v554
    %v587 = vpack.c.b16 %v557, %v556
    %v588 = vpack.c.b16 %v559, %v558
    %v589 = vpack.c.b16 %v561, %v560
    %v590 = vpack.c.b16 %v563, %v562
    %v591 = vpack.c.b16 %v565, %v564
    %v592 = vpack.c.b16 %v567, %v566
    %v593 = vpack.c.b16 %v569, %v568
    %v594 = vpack.c.b16 %v571, %v570
    %v595 = vpack.c.b16 %v573, %v572
    %v596 = vpack.c.b16 %v575, %v574
    %v597 = vpack.c.b16 %v577, %v576
    %v598 = vpack.c.b16 %v579, %v578
    %v599 = vpack.c.b16 %v581, %v580
    %v600 = vpack.c.b16 %v583, %v582
    %v601 = vpack.c.b16 %v585, %v584
    %618 = vmatprep.subr.bf16.mxu0 0
    %619 = vmatpush1.bf16.msra.mxu0 %v586
    %620 = vmatprep.subr.bf16.mxu0 0
    %621 = vmatpush1.bf16.msra.mxu0 %v587
    %622 = vmatprep.subr.bf16.mxu0 0
    %623 = vmatpush1.bf16.msra.mxu0 %v588
    %624 = vmatprep.subr.bf16.mxu0 0
    %625 = vmatpush1.bf16.msra.mxu0 %v589
    %626 = vmatprep.subr.bf16.mxu0 0
    %627 = vmatpush1.bf16.msra.mxu0 %v590
    %628 = vmatprep.subr.bf16.mxu0 0
    %629 = vmatpush1.bf16.msra.mxu0 %v591
    %630 = vmatprep.subr.bf16.mxu0 0
    %631 = vmatpush1.bf16.msra.mxu0 %v592
    %632 = vmatprep.subr.bf16.mxu0 0
    %633 = vmatpush1.bf16.msra.mxu0 %v593
    %634 = vmatprep.subr.bf16.mxu0 0
    %635 = vmatpush1.bf16.msra.mxu0 %v594
    %636 = vmatprep.subr.bf16.mxu0 0
    %637 = vmatpush1.bf16.msra.mxu0 %v595
    %638 = vmatprep.subr.bf16.mxu0 0
    %639 = vmatpush1.bf16.msra.mxu0 %v596
    %640 = vmatprep.subr.bf16.mxu0 0
    %641 = vmatpush1.bf16.msra.mxu0 %v597
    %642 = vmatprep.subr.bf16.mxu0 0
    %643 = vmatpush1.bf16.msra.mxu0 %v598
    %644 = vmatprep.subr.bf16.mxu0 0
    %645 = vmatpush1.bf16.msra.mxu0 %v599
    %646 = vmatprep.subr.bf16.mxu0 0
    %647 = vmatpush1.bf16.msra.mxu0 %v600
    %648 = vmatprep.subr.bf16.mxu0 0
    %649 = vmatpush1.bf16.msra.mxu0 %v601
    %650 = vmatprep.mubr.bf16.mxu0 %v480
    %651 = vmatmul.mubr.bf16.gmra.mrb[0].mxu0 %v479
    %v652 = vpop.f32.mrb[0].mxu0
    %v653 = vadd.f32 %v520, %v652
    %v654 = vpop.f32.mrb[0].mxu0
    %v655 = vpop.f32.mrb[0].mxu0
    %v656 = vpop.f32.mrb[0].mxu0
    %657 = vdwg.mxu0
    %v658 = vmul.f32 %v653, 0.5
    %v659 = vmul.f32 %v653, 0.70710677
    %v660 = verf.f32.pop %v659
    %v661 = vadd.f32 %v660, 1.0
    %v662 = vmul.f32 %v658, %v661
    %v663 = vpack.c.bf16 %v662, %v662
    %s664 = scalar_lea.vmem [#allocation10], 128
    %v665 = vld [vmem:[%s664] sm:$0xff]
    %v666 = vld [vmem:[%s664 + $0x8] sm:$0xff]
    %v667 = vld [vmem:[%s664 + $0x10] sm:$0xff]
    %v668 = vld [vmem:[%s664 + $0x18] sm:$0xff]
    %v669 = vld [vmem:[%s664 + $0x20] sm:$0xff]
    %v670 = vld [vmem:[%s664 + $0x28] sm:$0xff]
    %v671 = vld [vmem:[%s664 + $0x30] sm:$0xff]
    %v672 = vld [vmem:[%s664 + $0x38] sm:$0xff]
    %v673 = vld [vmem:[%s664 + $0x40] sm:$0xff]
    %v674 = vld [vmem:[%s664 + $0x48] sm:$0xff]
    %v675 = vld [vmem:[%s664 + $0x50] sm:$0xff]
    %v676 = vld [vmem:[%s664 + $0x58] sm:$0xff]
    %v677 = vld [vmem:[%s664 + $0x60] sm:$0xff]
    %v678 = vld [vmem:[%s664 + $0x68] sm:$0xff]
    %v679 = vld [vmem:[%s664 + $0x70] sm:$0xff]
    %v680 = vld [vmem:[%s664 + $0x78] sm:$0xff]
    %s681 = scalar_lea.vmem %s6, 2
    %v682 = vld [vmem:[%s681] sm:$0x3]
    %v684 = vlaneseq
    %v685 = vshrl.u32 %v684, 7
    %v686 = vsub.s32 0, %v685
    %v687 = vrot.slane %v682, %v686
    %v688 = vlaneseq
    %v689 = vshrl.u32 %v688, 7
    %v690 = vsub.s32 1, %v689
    %v691 = vrot.slane %v682, %v690
    %v710 = vunpack.c.l.b16 %v665
    %v711 = vunpack.c.h.b16 %v665
    %v712 = vunpack.c.l.b16 %v666
    %v713 = vunpack.c.h.b16 %v666
    %v714 = vunpack.c.l.b16 %v667
    %v715 = vunpack.c.h.b16 %v667
    %v716 = vunpack.c.l.b16 %v668
    %v717 = vunpack.c.h.b16 %v668
    %v718 = vunpack.c.l.b16 %v669
    %v719 = vunpack.c.h.b16 %v669
    %v720 = vunpack.c.l.b16 %v670
    %v721 = vunpack.c.h.b16 %v670
    %v722 = vunpack.c.l.b16 %v671
    %v723 = vunpack.c.h.b16 %v671
    %v724 = vunpack.c.l.b16 %v672
    %v725 = vunpack.c.h.b16 %v672
    %v726 = vunpack.c.l.b16 %v673
    %v727 = vunpack.c.h.b16 %v673
    %v728 = vunpack.c.l.b16 %v674
    %v729 = vunpack.c.h.b16 %v674
    %v730 = vunpack.c.l.b16 %v675
    %v731 = vunpack.c.h.b16 %v675
    %v732 = vunpack.c.l.b16 %v676
    %v733 = vunpack.c.h.b16 %v676
    %v734 = vunpack.c.l.b16 %v677
    %v735 = vunpack.c.h.b16 %v677
    %v736 = vunpack.c.l.b16 %v678
    %v737 = vunpack.c.h.b16 %v678
    %v738 = vunpack.c.l.b16 %v679
    %v739 = vunpack.c.h.b16 %v679
    %v740 = vunpack.c.l.b16 %v680
    %v741 = vunpack.c.h.b16 %v680
    %v742 = vpack.c.b16 %v712, %v710
    %v743 = vpack.c.b16 %v713, %v711
    %v744 = vpack.c.b16 %v716, %v714
    %v745 = vpack.c.b16 %v717, %v715
    %v746 = vpack.c.b16 %v720, %v718
    %v747 = vpack.c.b16 %v721, %v719
    %v748 = vpack.c.b16 %v724, %v722
    %v749 = vpack.c.b16 %v725, %v723
    %v750 = vpack.c.b16 %v728, %v726
    %v751 = vpack.c.b16 %v729, %v727
    %v752 = vpack.c.b16 %v732, %v730
    %v753 = vpack.c.b16 %v733, %v731
    %v754 = vpack.c.b16 %v736, %v734
    %v755 = vpack.c.b16 %v737, %v735
    %v756 = vpack.c.b16 %v740, %v738
    %v757 = vpack.c.b16 %v741, %v739
    %774 = vmatprep.subr.bf16.mxu0 %v743
    %775 = vmatpush1.bf16.msra.mxu0 %v742
    %776 = vmatprep.subr.bf16.mxu0 %v745
    %777 = vmatpush1.bf16.msra.mxu0 %v744
    %778 = vmatprep.subr.bf16.mxu0 %v747
    %779 = vmatpush1.bf16.msra.mxu0 %v746
    %780 = vmatprep.subr.bf16.mxu0 %v749
    %781 = vmatpush1.bf16.msra.mxu0 %v748
    %782 = vmatprep.subr.bf16.mxu0 %v751
    %783 = vmatpush1.bf16.msra.mxu0 %v750
    %784 = vmatprep.subr.bf16.mxu0 %v753
    %785 = vmatpush1.bf16.msra.mxu0 %v752
    %786 = vmatprep.subr.bf16.mxu0 %v755
    %787 = vmatpush1.bf16.msra.mxu0 %v754
    %788 = vmatprep.subr.bf16.mxu0 %v757
    %789 = vmatpush1.bf16.msra.mxu0 %v756
    %790 = vmatprep.subr.bf16.mxu0 0
    %791 = vmatpush1.bf16.msra.mxu0 0
    %792 = vmatprep.subr.bf16.mxu0 0
    %793 = vmatpush1.bf16.msra.mxu0 0
    %794 = vmatprep.subr.bf16.mxu0 0
    %795 = vmatpush1.bf16.msra.mxu0 0
    %796 = vmatprep.subr.bf16.mxu0 0
    %797 = vmatpush1.bf16.msra.mxu0 0
    %798 = vmatprep.subr.bf16.mxu0 0
    %799 = vmatpush1.bf16.msra.mxu0 0
    %800 = vmatprep.subr.bf16.mxu0 0
    %801 = vmatpush1.bf16.msra.mxu0 0
    %802 = vmatprep.subr.bf16.mxu0 0
    %803 = vmatpush1.bf16.msra.mxu0 0
    %804 = vmatprep.subr.bf16.mxu0 0
    %805 = vmatpush1.bf16.msra.mxu0 0
    %806 = vmatprep.mubr.bf16.mxu0 0
    %807 = vmatmul.mubr.bf16.gmra.mrb[0].mxu0 %v663
    %v808 = vpop.f32.mrb[0].mxu0
    %v809 = vadd.f32 %v687, %v808
    %v810 = vpop.f32.mrb[0].mxu0
    %v811 = vadd.f32 %v691, %v810
    %v812 = vpop.f32.mrb[0].mxu0
    %v813 = vpop.f32.mrb[0].mxu0
    %814 = vdwg.mxu0
    %v815 = vadd.f32 %v477, %v809
    %v816 = vadd.f32 %v478, %v811
    %v817 = vpack.c.bf16 %v815, %v815
    %v818 = vpack.c.bf16 %v816, %v816
    %v819 = vld [vmem:[#allocation11] sm:$0xf]
    %v820 = vld [vmem:[#allocation11 + $0x4] sm:$0xf]
    %v821 = vld [vmem:[#allocation11 + $0x8] sm:$0xf]
    %v822 = vld [vmem:[#allocation11 + $0xc] sm:$0xf]
    %v823 = vld [vmem:[#allocation11 + $0x10] sm:$0xf]
    %v824 = vld [vmem:[#allocation11 + $0x14] sm:$0xf]
    %v825 = vld [vmem:[#allocation11 + $0x18] sm:$0xf]
    %v826 = vld [vmem:[#allocation11 + $0x1c] sm:$0xf]
    %v827 = vld [vmem:[#allocation11 + $0x20] sm:$0xf]
    %v828 = vld [vmem:[#allocation11 + $0x24] sm:$0xf]
    %v829 = vld [vmem:[#allocation11 + $0x28] sm:$0xf]
    %v830 = vld [vmem:[#allocation11 + $0x2c] sm:$0xf]
    %v831 = vld [vmem:[#allocation11 + $0x30] sm:$0xf]
    %v832 = vld [vmem:[#allocation11 + $0x34] sm:$0xf]
    %v833 = vld [vmem:[#allocation11 + $0x38] sm:$0xf]
    %v834 = vld [vmem:[#allocation11 + $0x3c] sm:$0xf]
    %v835 = vld [vmem:[#allocation11 + $0x40] sm:$0xf]
    %v836 = vld [vmem:[#allocation11 + $0x44] sm:$0xf]
    %v837 = vld [vmem:[#allocation11 + $0x48] sm:$0xf]
    %v838 = vld [vmem:[#allocation11 + $0x4c] sm:$0xf]
    %v839 = vld [vmem:[#allocation11 + $0x50] sm:$0xf]
    %v840 = vld [vmem:[#allocation11 + $0x54] sm:$0xf]
    %v841 = vld [vmem:[#allocation11 + $0x58] sm:$0xf]
    %v842 = vld [vmem:[#allocation11 + $0x5c] sm:$0xf]
    %v843 = vld [vmem:[#allocation11 + $0x60] sm:$0xf]
    %v844 = vld [vmem:[#allocation11 + $0x64] sm:$0xf]
    %v845 = vld [vmem:[#allocation11 + $0x68] sm:$0xf]
    %v846 = vld [vmem:[#allocation11 + $0x6c] sm:$0xf]
    %v847 = vld [vmem:[#allocation11 + $0x70] sm:$0xf]
    %v848 = vld [vmem:[#allocation11 + $0x74] sm:$0xf]
    %v849 = vld [vmem:[#allocation11 + $0x78] sm:$0xf]
    %v850 = vld [vmem:[#allocation11 + $0x7c] sm:$0xf]
    %v851 = vld [vmem:[#allocation5] sm:$0xff]
    %v852 = vpack.c.bf16 %v851, %v851
    %v853 = vld [vmem:[#allocation13] sm:$0xf]
    %v854 = vld [vmem:[#allocation13 + $0x4] sm:$0xf]
    %v855 = vld [vmem:[#allocation13 + $0x8] sm:$0xf]
    %v856 = vld [vmem:[#allocation13 + $0xc] sm:$0xf]
    %v857 = vld [vmem:[#allocation13 + $0x10] sm:$0xf]
    %v858 = vld [vmem:[#allocation13 + $0x14] sm:$0xf]
    %v859 = vld [vmem:[#allocation13 + $0x18] sm:$0xf]
    %v860 = vld [vmem:[#allocation13 + $0x1c] sm:$0xf]
    %v861 = vld [vmem:[#allocation13 + $0x20] sm:$0xf]
    %v862 = vld [vmem:[#allocation13 + $0x24] sm:$0xf]
    %v863 = vld [vmem:[#allocation13 + $0x28] sm:$0xf]
    %v864 = vld [vmem:[#allocation13 + $0x2c] sm:$0xf]
    %v865 = vld [vmem:[#allocation13 + $0x30] sm:$0xf]
    %v866 = vld [vmem:[#allocation13 + $0x34] sm:$0xf]
    %v867 = vld [vmem:[#allocation13 + $0x38] sm:$0xf]
    %v868 = vld [vmem:[#allocation13 + $0x3c] sm:$0xf]
    %v885 = vunpack.c.l.b16 %v853
    %v886 = vunpack.c.l.b16 %v854
    %v887 = vunpack.c.l.b16 %v855
    %v888 = vunpack.c.l.b16 %v856
    %v889 = vunpack.c.l.b16 %v857
    %v890 = vunpack.c.l.b16 %v858
    %v891 = vunpack.c.l.b16 %v859
    %v892 = vunpack.c.l.b16 %v860
    %v893 = vunpack.c.l.b16 %v861
    %v894 = vunpack.c.l.b16 %v862
    %v895 = vunpack.c.l.b16 %v863
    %v896 = vunpack.c.l.b16 %v864
    %v897 = vunpack.c.l.b16 %v865
    %v898 = vunpack.c.l.b16 %v866
    %v899 = vunpack.c.l.b16 %v867
    %v900 = vunpack.c.l.b16 %v868
    %v901 = vpack.c.b16 %v886, %v885
    %v902 = vpack.c.b16 %v888, %v887
    %v903 = vpack.c.b16 %v890, %v889
    %v904 = vpack.c.b16 %v892, %v891
    %v905 = vpack.c.b16 %v894, %v893
    %v906 = vpack.c.b16 %v896, %v895
    %v907 = vpack.c.b16 %v898, %v897
    %v908 = vpack.c.b16 %v900, %v899
    %917 = vmatprep.subr.bf16.mxu0 0
    %918 = vmatpush1.bf16.msra.mxu0 %v901
    %919 = vmatprep.subr.bf16.mxu0 0
    %920 = vmatpush1.bf16.msra.mxu0 %v902
    %921 = vmatprep.subr.bf16.mxu0 0
    %922 = vmatpush1.bf16.msra.mxu0 %v903
    %923 = vmatprep.subr.bf16.mxu0 0
    %924 = vmatpush1.bf16.msra.mxu0 %v904
    %925 = vmatprep.subr.bf16.mxu0 0
    %926 = vmatpush1.bf16.msra.mxu0 %v905
    %927 = vmatprep.subr.bf16.mxu0 0
    %928 = vmatpush1.bf16.msra.mxu0 %v906
    %929 = vmatprep.subr.bf16.mxu0 0
    %930 = vmatpush1.bf16.msra.mxu0 %v907
    %931 = vmatprep.subr.bf16.mxu0 0
    %932 = vmatpush1.bf16.msra.mxu0 %v908
    %933 = vmatprep.subr.bf16.mxu0 0
    %934 = vmatpush1.bf16.msra.mxu0 0
    %935 = vmatprep.subr.bf16.mxu0 0
    %936 = vmatpush1.bf16.msra.mxu0 0
    %937 = vmatprep.subr.bf16.mxu0 0
    %938 = vmatpush1.bf16.msra.mxu0 0
    %939 = vmatprep.subr.bf16.mxu0 0
    %940 = vmatpush1.bf16.msra.mxu0 0
    %941 = vmatprep.subr.bf16.mxu0 0
    %942 = vmatpush1.bf16.msra.mxu0 0
    %943 = vmatprep.subr.bf16.mxu0 0
    %944 = vmatpush1.bf16.msra.mxu0 0
    %945 = vmatprep.subr.bf16.mxu0 0
    %946 = vmatpush1.bf16.msra.mxu0 0
    %947 = vmatprep.subr.bf16.mxu0 0
    %948 = vmatpush1.bf16.msra.mxu0 0
    %949 = vmatprep.mubr.bf16.mxu0 0
    %950 = vmatmul.mubr.bf16.gmra.mrb[0].mxu0 %v852
    %v951 = vpop.f32.mrb[0].mxu0
    %v952 = vadd.f32 0.0, %v951
    %v953 = vpop.f32.mrb[0].mxu0
    %v954 = vpop.f32.mrb[0].mxu0
    %v955 = vpop.f32.mrb[0].mxu0
    %956 = vdwg.mxu0
    %v989 = vunpack.c.l.b16 %v819
    %v990 = vunpack.c.l.b16 %v820
    %v991 = vunpack.c.l.b16 %v821
    %v992 = vunpack.c.l.b16 %v822
    %v993 = vunpack.c.l.b16 %v823
    %v994 = vunpack.c.l.b16 %v824
    %v995 = vunpack.c.l.b16 %v825
    %v996 = vunpack.c.l.b16 %v826
    %v997 = vunpack.c.l.b16 %v827
    %v998 = vunpack.c.l.b16 %v828
    %v999 = vunpack.c.l.b16 %v829
    %v1000 = vunpack.c.l.b16 %v830
    %v1001 = vunpack.c.l.b16 %v831
    %v1002 = vunpack.c.l.b16 %v832
    %v1003 = vunpack.c.l.b16 %v833
    %v1004 = vunpack.c.l.b16 %v834
    %v1005 = vunpack.c.l.b16 %v835
    %v1006 = vunpack.c.l.b16 %v836
    %v1007 = vunpack.c.l.b16 %v837
    %v1008 = vunpack.c.l.b16 %v838
    %v1009 = vunpack.c.l.b16 %v839
    %v1010 = vunpack.c.l.b16 %v840
    %v1011 = vunpack.c.l.b16 %v841
    %v1012 = vunpack.c.l.b16 %v842
    %v1013 = vunpack.c.l.b16 %v843
    %v1014 = vunpack.c.l.b16 %v844
    %v1015 = vunpack.c.l.b16 %v845
    %v1016 = vunpack.c.l.b16 %v846
    %v1017 = vunpack.c.l.b16 %v847
    %v1018 = vunpack.c.l.b16 %v848
    %v1019 = vunpack.c.l.b16 %v849
    %v1020 = vunpack.c.l.b16 %v850
    %v1021 = vpack.c.b16 %v990, %v989
    %v1022 = vpack.c.b16 %v992, %v991
    %v1023 = vpack.c.b16 %v994, %v993
    %v1024 = vpack.c.b16 %v996, %v995
    %v1025 = vpack.c.b16 %v998, %v997
    %v1026 = vpack.c.b16 %v1000, %v999
    %v1027 = vpack.c.b16 %v1002, %v1001
    %v1028 = vpack.c.b16 %v1004, %v1003
    %v1029 = vpack.c.b16 %v1006, %v1005
    %v1030 = vpack.c.b16 %v1008, %v1007
    %v1031 = vpack.c.b16 %v1010, %v1009
    %v1032 = vpack.c.b16 %v1012, %v1011
    %v1033 = vpack.c.b16 %v1014, %v1013
    %v1034 = vpack.c.b16 %v1016, %v1015
    %v1035 = vpack.c.b16 %v1018, %v1017
    %v1036 = vpack.c.b16 %v1020, %v1019
    %1053 = vmatprep.subr.bf16.mxu0 0
    %1054 = vmatpush1.bf16.msra.mxu0 %v1021
    %1055 = vmatprep.subr.bf16.mxu0 0
    %1056 = vmatpush1.bf16.msra.mxu0 %v1022
    %1057 = vmatprep.subr.bf16.mxu0 0
    %1058 = vmatpush1.bf16.msra.mxu0 %v1023
    %1059 = vmatprep.subr.bf16.mxu0 0
    %1060 = vmatpush1.bf16.msra.mxu0 %v1024
    %1061 = vmatprep.subr.bf16.mxu0 0
    %1062 = vmatpush1.bf16.msra.mxu0 %v1025
    %1063 = vmatprep.subr.bf16.mxu0 0
    %1064 = vmatpush1.bf16.msra.mxu0 %v1026
    %1065 = vmatprep.subr.bf16.mxu0 0
    %1066 = vmatpush1.bf16.msra.mxu0 %v1027
    %1067 = vmatprep.subr.bf16.mxu0 0
    %1068 = vmatpush1.bf16.msra.mxu0 %v1028
    %1069 = vmatprep.subr.bf16.mxu0 0
    %1070 = vmatpush1.bf16.msra.mxu0 %v1029
    %1071 = vmatprep.subr.bf16.mxu0 0
    %1072 = vmatpush1.bf16.msra.mxu0 %v1030
    %1073 = vmatprep.subr.bf16.mxu0 0
    %1074 = vmatpush1.bf16.msra.mxu0 %v1031
    %1075 = vmatprep.subr.bf16.mxu0 0
    %1076 = vmatpush1.bf16.msra.mxu0 %v1032
    %1077 = vmatprep.subr.bf16.mxu0 0
    %1078 = vmatpush1.bf16.msra.mxu0 %v1033
    %1079 = vmatprep.subr.bf16.mxu0 0
    %1080 = vmatpush1.bf16.msra.mxu0 %v1034
    %1081 = vmatprep.subr.bf16.mxu0 0
    %1082 = vmatpush1.bf16.msra.mxu0 %v1035
    %1083 = vmatprep.subr.bf16.mxu0 0
    %1084 = vmatpush1.bf16.msra.mxu0 %v1036
    %1085 = vmatprep.mubr.bf16.mxu0 %v818
    %1086 = vmatmul.mubr.bf16.gmra.mrb[0].mxu0 %v817
    %v1087 = vpop.f32.mrb[0].mxu0
    %v1088 = vadd.f32 %v952, %v1087
    %v1089 = vpop.f32.mrb[0].mxu0
    %v1090 = vpop.f32.mrb[0].mxu0
    %v1091 = vpop.f32.mrb[0].mxu0
    %1092 = vdwg.mxu0
    %v1093 = vld [vmem:[#allocation7] sm:$0xff]
    %v1094 = vpack.c.bf16 %v1093, %v1093
    %v1095 = vld [vmem:[#allocation14] sm:$0xf]
    %v1096 = vld [vmem:[#allocation14 + $0x4] sm:$0xf]
    %v1097 = vld [vmem:[#allocation14 + $0x8] sm:$0xf]
    %v1098 = vld [vmem:[#allocation14 + $0xc] sm:$0xf]
    %v1099 = vld [vmem:[#allocation14 + $0x10] sm:$0xf]
    %v1100 = vld [vmem:[#allocation14 + $0x14] sm:$0xf]
    %v1101 = vld [vmem:[#allocation14 + $0x18] sm:$0xf]
    %v1102 = vld [vmem:[#allocation14 + $0x1c] sm:$0xf]
    %v1103 = vld [vmem:[#allocation14 + $0x20] sm:$0xf]
    %v1104 = vld [vmem:[#allocation14 + $0x24] sm:$0xf]
    %v1105 = vld [vmem:[#allocation14 + $0x28] sm:$0xf]
    %v1106 = vld [vmem:[#allocation14 + $0x2c] sm:$0xf]
    %v1107 = vld [vmem:[#allocation14 + $0x30] sm:$0xf]
    %v1108 = vld [vmem:[#allocation14 + $0x34] sm:$0xf]
    %v1109 = vld [vmem:[#allocation14 + $0x38] sm:$0xf]
    %v1110 = vld [vmem:[#allocation14 + $0x3c] sm:$0xf]
    %v1127 = vunpack.c.l.b16 %v1095
    %v1128 = vunpack.c.l.b16 %v1096
    %v1129 = vunpack.c.l.b16 %v1097
    %v1130 = vunpack.c.l.b16 %v1098
    %v1131 = vunpack.c.l.b16 %v1099
    %v1132 = vunpack.c.l.b16 %v1100
    %v1133 = vunpack.c.l.b16 %v1101
    %v1134 = vunpack.c.l.b16 %v1102
    %v1135 = vunpack.c.l.b16 %v1103
    %v1136 = vunpack.c.l.b16 %v1104
    %v1137 = vunpack.c.l.b16 %v1105
    %v1138 = vunpack.c.l.b16 %v1106
    %v1139 = vunpack.c.l.b16 %v1107
    %v1140 = vunpack.c.l.b16 %v1108
    %v1141 = vunpack.c.l.b16 %v1109
    %v1142 = vunpack.c.l.b16 %v1110
    %v1143 = vpack.c.b16 %v1128, %v1127
    %v1144 = vpack.c.b16 %v1130, %v1129
    %v1145 = vpack.c.b16 %v1132, %v1131
    %v1146 = vpack.c.b16 %v1134, %v1133
    %v1147 = vpack.c.b16 %v1136, %v1135
    %v1148 = vpack.c.b16 %v1138, %v1137
    %v1149 = vpack.c.b16 %v1140, %v1139
    %v1150 = vpack.c.b16 %v1142, %v1141
    %1159 = vmatprep.subr.bf16.mxu0 0
    %1160 = vmatpush1.bf16.msra.mxu0 %v1143
    %1161 = vmatprep.subr.bf16.mxu0 0
    %1162 = vmatpush1.bf16.msra.mxu0 %v1144
    %1163 = vmatprep.subr.bf16.mxu0 0
    %1164 = vmatpush1.bf16.msra.mxu0 %v1145
    %1165 = vmatprep.subr.bf16.mxu0 0
    %1166 = vmatpush1.bf16.msra.mxu0 %v1146
    %1167 = vmatprep.subr.bf16.mxu0 0
    %1168 = vmatpush1.bf16.msra.mxu0 %v1147
    %1169 = vmatprep.subr.bf16.mxu0 0
    %1170 = vmatpush1.bf16.msra.mxu0 %v1148
    %1171 = vmatprep.subr.bf16.mxu0 0
    %1172 = vmatpush1.bf16.msra.mxu0 %v1149
    %1173 = vmatprep.subr.bf16.mxu0 0
    %1174 = vmatpush1.bf16.msra.mxu0 %v1150
    %1175 = vmatprep.subr.bf16.mxu0 0
    %1176 = vmatpush1.bf16.msra.mxu0 0
    %1177 = vmatprep.subr.bf16.mxu0 0
    %1178 = vmatpush1.bf16.msra.mxu0 0
    %1179 = vmatprep.subr.bf16.mxu0 0
    %1180 = vmatpush1.bf16.msra.mxu0 0
    %1181 = vmatprep.subr.bf16.mxu0 0
    %1182 = vmatpush1.bf16.msra.mxu0 0
    %1183 = vmatprep.subr.bf16.mxu0 0
    %1184 = vmatpush1.bf16.msra.mxu0 0
    %1185 = vmatprep.subr.bf16.mxu0 0
    %1186 = vmatpush1.bf16.msra.mxu0 0
    %1187 = vmatprep.subr.bf16.mxu0 0
    %1188 = vmatpush1.bf16.msra.mxu0 0
    %1189 = vmatprep.subr.bf16.mxu0 0
    %1190 = vmatpush1.bf16.msra.mxu0 0
    %1191 = vmatprep.mubr.bf16.mxu0 0
    %1192 = vmatmul.mubr.bf16.gmra.mrb[0].mxu0 %v1094
    %v1193 = vpop.f32.mrb[0].mxu0
    %v1194 = vadd.f32 0.0, %v1193
    %v1195 = vpop.f32.mrb[0].mxu0
    %v1196 = vpop.f32.mrb[0].mxu0
    %v1197 = vpop.f32.mrb[0].mxu0
    %1198 = vdwg.mxu0
    %v1199 = vadd.f32 %v1088, %v1194
    %v1200 = vld [vmem:[%s10] sm:$0x1]
    %v1202 = vlaneseq
    %v1203 = vshrl.u32 %v1202, 7
    %v1204 = vsub.s32 0, %v1203
    %v1205 = vrot.slane %v1200, %v1204
    %v1207 = vadd.f32 %v1199, %v1205
    %1208 = vst [vmem:[#allocation16] sm:$0xff] %v1207
    // Predicated region
    $region78: #{tpu_custom_call.1} parent=1 // pred_check
      _
    $region79: #{tpu_custom_call.1} parent=1 // pred_check_branch
      %1210 = sbr.rel (0) target = $region81
    $region80: #{tpu_custom_call.1} parent=1 // pred_region
      %s1212 = ssub.s32 128, 128
      %1213 = vsyncadd [#allocation4], %s1212
      %s1215 = sshll.u32 [#allocation16], 4
      %s1216 = int_to_ptr.vmem [resolvable:$true] %s1215
      %1218 = dma.vmem_to_hbm [thread:$0]  %s1216, 128, %s11, [#allocation4]
    $region81: #{tpu_custom_call.1} parent=1 // pred_fallthru
      _
    // Predicated region
    $region82: #{tpu_custom_call.1} parent=1 // pred_check
      _
    $region83: #{tpu_custom_call.1} parent=1 // pred_check_branch
      %1220 = sbr.rel (0) target = $region85
    $region84: #{tpu_custom_call.1} parent=1 // pred_region
      %1221 = dma.done [#allocation4], 128
    $region85: #{tpu_custom_call.1} parent=1 // pred_fallthru
      _
    %1222 = vsyncpa [#allocation3], 1
    %1223 = vsyncpa [#allocation6], 1
    %1224 = vsyncpa [#allocation9], 1
    %1225 = vsyncpa [#allocation12], 1
    %1226 = vsyncpa [#allocation15], 1
    %1227 = vsyncpa [#allocation4], 1

</llo_original>
